<compile_context>
chip_gen: v6e
topology: v6e:2x2x1
jax: 0.10.0
libtpu: 0.0.40
codegen_flags: <defaults>
</compile_context>

<pallas_src>
import jax
import jax.numpy as jnp
from jax.experimental import pallas as pl
from jax.experimental.pallas import tpu as pltpu

LANE_TILE = 128  # batch tile width (lanes)


def xornet_kernel(p_ref, xT_ref, oT_ref):
    """p_ref: SMEM f32[9] packed params; xT_ref: VMEM (2, TB); oT_ref: VMEM (1, TB).

    Params packed (PyTorch (out, in) layout):
      [w1_00, w1_01, w1_10, w1_11, b1_0, b1_1, w2_00, w2_01, b2_0]
    """
    x0 = xT_ref[0:1, :]  # feature 0 across lanes, shape (1, TB)
    x1 = xT_ref[1:2, :]  # feature 1 across lanes

    # fc1: two broadcast FMAs per output unit (VPU), sigmoid on EUP.
    h0 = jax.nn.sigmoid(p_ref[0] * x0 + p_ref[1] * x1 + p_ref[4])
    h1 = jax.nn.sigmoid(p_ref[2] * x0 + p_ref[3] * x1 + p_ref[5])

    # fc2: single output unit.
    z2 = p_ref[6] * h0 + p_ref[7] * h1 + p_ref[8]
    oT_ref[...] = jax.nn.sigmoid(z2)


def xornet_forward(x, w1, b1, w2, b2, *, tb=LANE_TILE):
    """x: (B, 2) f32. w1: (2, 2), b1: (2,), w2: (1, 2), b2: (1,) (PyTorch layout).

    Returns (B, 1) f32 == sigmoid(sigmoid(x @ w1.T + b1) @ w2.T + b2).
    """
    B = x.shape[0]
    n_blocks = pl.cdiv(B, tb)
    B_pad = n_blocks * tb

    # Lane-dense layout: batch -> lanes.
    xT = jnp.zeros((2, B_pad), jnp.float32).at[:, :B].set(x.T.astype(jnp.float32))

    # Single packed parameter slab -> SMEM via scalar prefetch (one transfer).
    params = jnp.concatenate(
        [w1.reshape(-1), b1.reshape(-1), w2.reshape(-1), b2.reshape(-1)]
    ).astype(jnp.float32)  # (9,)

    yT = pl.pallas_call(
        xornet_kernel,
        out_shape=jax.ShapeDtypeStruct((1, B_pad), jnp.float32),
        grid_spec=pltpu.PrefetchScalarGridSpec(
            num_scalar_prefetch=1,
            grid=(n_blocks,),
            in_specs=[pl.BlockSpec((2, tb), lambda i, p: (0, i))],
            out_specs=pl.BlockSpec((1, tb), lambda i, p: (0, i)),
        ),
        compiler_params=pltpu.CompilerParams(
            dimension_semantics=("parallel",),
        ),
    )(params, xT)

    return yT[:, :B].T  # (B, 1)


def init_params(key):
    # Deterministic init mimicking nn.Linear's uniform(-1/sqrt(fan_in), 1/sqrt(fan_in)).
    k1, k2, k3, k4 = jax.random.split(key, 4)
    bound = 1.0 / jnp.sqrt(2.0)  # fan_in = 2 for both layers
    w1 = jax.random.uniform(k1, (2, 2), jnp.float32, -bound, bound)  # (out, in)
    b1 = jax.random.uniform(k2, (2,), jnp.float32, -bound, bound)
    w2 = jax.random.uniform(k3, (1, 2), jnp.float32, -bound, bound)  # (out, in)
    b2 = jax.random.uniform(k4, (1,), jnp.float32, -bound, bound)
    return w1, b1, w2, b2


if __name__ == "__main__":
    key = jax.random.PRNGKey(0)
    kx, kp = jax.random.split(key)

    # Small batch of XOR-style inputs (binary pairs), batch=8.
    B = 8
    x = jax.random.bernoulli(kx, 0.5, (B, 2)).astype(jnp.float32)

    w1, b1, w2, b2 = init_params(kp)

    out = xornet_forward(x, w1, b1, w2, b2)
    out = jax.block_until_ready(out)

    # Reference check in plain JAX (same math as the PyTorch forward).
    h_ref = jax.nn.sigmoid(x @ w1.T + b1)
    y_ref = jax.nn.sigmoid(h_ref @ w2.T + b2)
    assert out.shape == (B, 1)
    assert jnp.allclose(out, y_ref, atol=1e-5), "mismatch vs reference"

    print("KERNEL_OK")
</pallas_src>

<mosaic_0001>
module attributes {stable_mosaic.version = 11 : i64} {
  func.func @xornet_kernel(%arg0: i32, %arg1: memref<9xf32, #tpu.memory_space<smem>>, %arg2: memref<2x128xf32, #tpu.memory_space<vmem>>, %arg3: memref<1x128xf32, #tpu.memory_space<vmem>>) attributes {dimension_semantics = [#tpu.dimension_semantics<parallel>], iteration_bounds = array<i64: 1>, scalar_prefetch = 1 : i64, scratch_operands = 0 : i64, tpu.core_type = #tpu.core_type<tc>, window_params = [{transform_indices = @transform_0, window_bounds = array<i64: 2, 128>}, {transform_indices = @transform_1, window_bounds = array<i64: 1, 128>}]} {
    %c0 = arith.constant 0 : index
    %c0_0 = arith.constant 0 : index
    %0 = vector.load %arg2[%c0, %c0_0] : memref<2x128xf32, #tpu.memory_space<vmem>>, vector<1x128xf32>
    %c1 = arith.constant 1 : index
    %c0_1 = arith.constant 0 : index
    %1 = vector.load %arg2[%c1, %c0_1] : memref<2x128xf32, #tpu.memory_space<vmem>>, vector<1x128xf32>
    %c0_2 = arith.constant 0 : index
    %2 = memref.load %arg1[%c0_2] : memref<9xf32, #tpu.memory_space<smem>>
    %3 = vector.broadcast %2 : f32 to vector<1x128xf32>
    %4 = arith.mulf %3, %0 : vector<1x128xf32>
    %c1_3 = arith.constant 1 : index
    %5 = memref.load %arg1[%c1_3] : memref<9xf32, #tpu.memory_space<smem>>
    %6 = vector.broadcast %5 : f32 to vector<1x128xf32>
    %7 = arith.mulf %6, %1 : vector<1x128xf32>
    %8 = arith.addf %4, %7 : vector<1x128xf32>
    %c4 = arith.constant 4 : index
    %9 = memref.load %arg1[%c4] : memref<9xf32, #tpu.memory_space<smem>>
    %10 = vector.broadcast %9 : f32 to vector<1x128xf32>
    %11 = arith.addf %8, %10 : vector<1x128xf32>
    %12 = arith.negf %11 : vector<1x128xf32>
    %13 = math.exp %12 : vector<1x128xf32>
    %cst = arith.constant 1.000000e+00 : f32
    %14 = vector.broadcast %cst : f32 to vector<1x128xf32>
    %15 = arith.addf %14, %13 : vector<1x128xf32>
    %16 = arith.divf %14, %15 : vector<1x128xf32>
    %c2 = arith.constant 2 : index
    %17 = memref.load %arg1[%c2] : memref<9xf32, #tpu.memory_space<smem>>
    %18 = vector.broadcast %17 : f32 to vector<1x128xf32>
    %19 = arith.mulf %18, %0 : vector<1x128xf32>
    %c3 = arith.constant 3 : index
    %20 = memref.load %arg1[%c3] : memref<9xf32, #tpu.memory_space<smem>>
    %21 = vector.broadcast %20 : f32 to vector<1x128xf32>
    %22 = arith.mulf %21, %1 : vector<1x128xf32>
    %23 = arith.addf %19, %22 : vector<1x128xf32>
    %c5 = arith.constant 5 : index
    %24 = memref.load %arg1[%c5] : memref<9xf32, #tpu.memory_space<smem>>
    %25 = vector.broadcast %24 : f32 to vector<1x128xf32>
    %26 = arith.addf %23, %25 : vector<1x128xf32>
    %27 = arith.negf %26 : vector<1x128xf32>
    %28 = math.exp %27 : vector<1x128xf32>
    %cst_4 = arith.constant 1.000000e+00 : f32
    %29 = vector.broadcast %cst_4 : f32 to vector<1x128xf32>
    %30 = arith.addf %29, %28 : vector<1x128xf32>
    %31 = arith.divf %29, %30 : vector<1x128xf32>
    %c6 = arith.constant 6 : index
    %32 = memref.load %arg1[%c6] : memref<9xf32, #tpu.memory_space<smem>>
    %33 = vector.broadcast %32 : f32 to vector<1x128xf32>
    %34 = arith.mulf %33, %16 : vector<1x128xf32>
    %c7 = arith.constant 7 : index
    %35 = memref.load %arg1[%c7] : memref<9xf32, #tpu.memory_space<smem>>
    %36 = vector.broadcast %35 : f32 to vector<1x128xf32>
    %37 = arith.mulf %36, %31 : vector<1x128xf32>
    %38 = arith.addf %34, %37 : vector<1x128xf32>
    %c8 = arith.constant 8 : index
    %39 = memref.load %arg1[%c8] : memref<9xf32, #tpu.memory_space<smem>>
    %40 = vector.broadcast %39 : f32 to vector<1x128xf32>
    %41 = arith.addf %38, %40 : vector<1x128xf32>
    %42 = arith.negf %41 : vector<1x128xf32>
    %43 = math.exp %42 : vector<1x128xf32>
    %cst_5 = arith.constant 1.000000e+00 : f32
    %44 = vector.broadcast %cst_5 : f32 to vector<1x128xf32>
    %45 = arith.addf %44, %43 : vector<1x128xf32>
    %46 = arith.divf %44, %45 : vector<1x128xf32>
    %c0_6 = arith.constant 0 : index
    %c0_7 = arith.constant 0 : index
    %47 = vector.load %arg3[%c0_6, %c0_7] : memref<1x128xf32, #tpu.memory_space<vmem>>, vector<1x128xf32>
    tpu.vector_store %arg3[%c0_6, %c0_7], %46 {strides = array<i32>} : memref<1x128xf32, #tpu.memory_space<vmem>>, vector<1x128xf32>,
    return
  }
  func.func @transform_0(%arg0: i32, %arg1: memref<9xf32, #tpu.memory_space<smem>>) -> (i32, i32) {
    %c0_i32 = arith.constant 0 : i32
    %c0_i32_0 = arith.constant 0 : i32
    return %c0_i32, %arg0 : i32, i32
  }
  func.func @transform_1(%arg0: i32, %arg1: memref<9xf32, #tpu.memory_space<smem>>) -> (i32, i32) {
    %c0_i32 = arith.constant 0 : i32
    %c0_i32_0 = arith.constant 0 : i32
    return %c0_i32, %arg0 : i32, i32
  }
}

</mosaic_0001>

<llo_original>
// kernel: tpu_custom_call.1
$region0: #{tpu_custom_call.1}
  #allocation0 [shape = 'u32[]', space=smem, size = 0x4, offset = 0x4, fixed_abs, tag = 'smem constant byte address 0x4 - core index']
  #allocation1 [shape = 'u32[144,128]{1,0:T(1,128)}', space=vmem, size = 0x12000, scoped, tag = 'internal scratch']
  #allocation2 [shape = 's32[1]{0}', space=sflag, size = 0x4, scoped, tag = 'scoped memory for tpu_custom_call.1']
  #allocation3 [shape = 'u8[512]{0}', space=smem, size = 0x200, scoped, tag = 'prefetched SMEM operand 0']
  %s0 = inlined_call_operand.hbm [shape: f32[9], index: 0, kind: input, shape index: {}]
  %s1 = inlined_call_operand.hbm [shape: f32[2,128], index: 1, kind: input, shape index: {}]
  %s2 = inlined_call_operand.hbm [shape: f32[1,128], index: 2, kind: output, shape index: {}]
  %s3 = sld [smem:[#allocation0]]
  $region18: #{tpu_custom_call.1} parent=0
    _
  %s5 = ssub.s32 1, %s3
  %s6 = scalar_select 0, %s5, %s3
  %8 = dma.hbm_to_smem %s0, 16, [#allocation3], [#allocation2]
  %9 = dma.done [#allocation2], 16
  %10 = sfence
  $region1: #{tpu_custom_call.1} parent=0
    #allocation4 [shape = 'u8[1024]{0}', space=vmem, size = 0x400, scoped, tag = 'input window, operand 1, single buffered']
    #allocation5 [shape = 's32[1]{0}', space=sflag, size = 0x4, scoped, tag = 'scoped memory for tpu_custom_call.1']
    #allocation6 [shape = 's32[1]{0}', space=sflag, size = 0x4, scoped, tag = 'scoped memory for tpu_custom_call.1']
    #allocation7 [shape = 'u8[512]{0}', space=vmem, size = 0x400, scoped, tag = 'output window, operand 0, single buffered']
    %11 = vsyncpa [#allocation5], 0
    %12 = vsyncpa [#allocation6], 0
    // Predicated region
    $region2: #{tpu_custom_call.1} parent=1 // pred_check
      _
    $region3: #{tpu_custom_call.1} parent=1 // pred_check_branch
      %14 = sbr.rel (0) target = $region5
    $region4: #{tpu_custom_call.1} parent=1 // pred_region
      %s16 = ssub.s32 32, 32
      %17 = vsyncadd [#allocation5], %s16
      %s19 = sshll.u32 [#allocation4], 4
      %s20 = int_to_ptr.vmem [resolvable:$true] %s19
      %22 = dma.hbm_to_vmem [thread:$0]  %s1, 32, %s20, [#allocation5]
    $region5: #{tpu_custom_call.1} parent=1 // pred_fallthru
      _
    // Predicated region
    $region6: #{tpu_custom_call.1} parent=1 // pred_check
      _
    $region7: #{tpu_custom_call.1} parent=1 // pred_check_branch
      %24 = sbr.rel (0) target = $region9
    $region8: #{tpu_custom_call.1} parent=1 // pred_region
      %25 = dma.done [#allocation5], 32
    $region9: #{tpu_custom_call.1} parent=1 // pred_fallthru
      _
    %v26 = vld [vmem:[#allocation4] sm:$0x1]
    %v27 = vld [vmem:[#allocation4 + $0x1] sm:$0x1]
    %s28 = sld [smem:[#allocation3]]
    %v29 = vstv %s28
    %v30 = vmul.f32 %v29, %v26
    %s31 = sld [smem:[#allocation3 + $0x1]]
    %v32 = vstv %s31
    %v33 = vmul.f32 %v32, %v27
    %v34 = vadd.f32 %v30, %v33
    %s35 = sld [smem:[#allocation3 + $0x4]]
    %v36 = vstv %s35
    %v37 = vadd.f32 %v34, %v36
    %v38 = vxor.u32 %v37, 2147483648
    %v39 = vmul.f32 %v38, 1.442695
    %v40 = vpow.pop %v39
    %v41 = vadd.f32 %v40, 1.0
    %v42 = vrcp.pop %v41
    %v43 = vmul.f32 1.0, %v42
    %s44 = sld [smem:[#allocation3 + $0x2]]
    %v45 = vstv %s44
    %v46 = vmul.f32 %v45, %v26
    %s47 = sld [smem:[#allocation3 + $0x3]]
    %v48 = vstv %s47
    %v49 = vmul.f32 %v48, %v27
    %v50 = vadd.f32 %v46, %v49
    %s51 = sld [smem:[#allocation3 + $0x5]]
    %v52 = vstv %s51
    %v53 = vadd.f32 %v50, %v52
    %v54 = vxor.u32 %v53, 2147483648
    %v55 = vmul.f32 %v54, 1.442695
    %v56 = vpow.pop %v55
    %v57 = vadd.f32 %v56, 1.0
    %v58 = vrcp.pop %v57
    %v59 = vmul.f32 1.0, %v58
    %s60 = sld [smem:[#allocation3 + $0x6]]
    %v61 = vstv %s60
    %v62 = vmul.f32 %v61, %v43
    %s63 = sld [smem:[#allocation3 + $0x7]]
    %v64 = vstv %s63
    %v65 = vmul.f32 %v64, %v59
    %v66 = vadd.f32 %v62, %v65
    %s67 = sld [smem:[#allocation3 + $0x8]]
    %v68 = vstv %s67
    %v69 = vadd.f32 %v66, %v68
    %v70 = vxor.u32 %v69, 2147483648
    %v71 = vmul.f32 %v70, 1.442695
    %v72 = vpow.pop %v71
    %v73 = vadd.f32 %v72, 1.0
    %v74 = vrcp.pop %v73
    %v75 = vmul.f32 1.0, %v74
    %76 = vst [vmem:[#allocation7] sm:$0x1] %v75
    // Predicated region
    $region10: #{tpu_custom_call.1} parent=1 // pred_check
      _
    $region11: #{tpu_custom_call.1} parent=1 // pred_check_branch
      %78 = sbr.rel (0) target = $region13
    $region12: #{tpu_custom_call.1} parent=1 // pred_region
      %s80 = ssub.s32 16, 16
      %81 = vsyncadd [#allocation6], %s80
      %s83 = sshll.u32 [#allocation7], 4
      %s84 = int_to_ptr.vmem [resolvable:$true] %s83
      %86 = dma.vmem_to_hbm [thread:$0]  %s84, 16, %s2, [#allocation6]
    $region13: #{tpu_custom_call.1} parent=1 // pred_fallthru
      _
    // Predicated region
    $region14: #{tpu_custom_call.1} parent=1 // pred_check
      _
    $region15: #{tpu_custom_call.1} parent=1 // pred_check_branch
      %88 = sbr.rel (0) target = $region17
    $region16: #{tpu_custom_call.1} parent=1 // pred_region
      %89 = dma.done [#allocation6], 16
    $region17: #{tpu_custom_call.1} parent=1 // pred_fallthru
      _
    %90 = vsyncpa [#allocation5], 1
    %91 = vsyncpa [#allocation6], 1

</llo_original>
